<compile_context>
chip_gen: v5e
topology: v5e:2x2
jax: 0.10.0
libtpu: 0.0.40
codegen_flags: <defaults>
</compile_context>

<pallas_src>
import functools

import jax
import jax.numpy as jnp
from jax.experimental import pallas as pl
from jax.experimental.pallas import tpu as pltpu

_LANES = 128
_SUBLANES = 8
_MAX_TILE_ROWS = 512  # ~0.5 MiB/f32 tile per input (double-buffered) — safe on v5e/v7x


def _gloss_kernel(x_ref, xr_ref, z1_ref, z2_ref, y1_ref, y2_ref, o_ref, acc_ref,
                  *, w_en, w_con, w_adv, n_x, n_z, n_y):
    step = pl.program_id(0)

    # Step 0: compute the (small) enc/adv terms once, pre-weighted, as the
    # accumulator's initial value. Subtraction kept in f32 (cancellation).
    @pl.when(step == 0)
    def _init():
        dz = z1_ref[...].astype(jnp.float32) - z2_ref[...].astype(jnp.float32)
        dy = y1_ref[...].astype(jnp.float32) - y2_ref[...].astype(jnp.float32)
        acc_ref[...] = (
            (w_en / n_z) * jnp.sum(dz * dz, axis=0, keepdims=True)
            + (w_adv / n_y) * jnp.sum(dy * dy, axis=0, keepdims=True)
        )

    # Every step: accumulate this x-tile's L1 partial sums (sublane reduce ->
    # (1, 128) lane vector; cheap), pre-weighted by w_con / n_x.
    dx = x_ref[...].astype(jnp.float32) - xr_ref[...].astype(jnp.float32)
    acc_ref[...] += (w_con / n_x) * jnp.sum(jnp.abs(dx), axis=0, keepdims=True)

    # Last step: single cross-lane reduce, scalar result straight to SMEM.
    @pl.when(step == pl.num_programs(0) - 1)
    def _finalize():
        o_ref[0, 0] = jnp.sum(acc_ref[...])


def _pad_to_slab(a, row_multiple):
    """Flatten to a zero-padded lane-dense (rows, 128) slab; rows % row_multiple == 0."""
    n = a.size
    rows = -(-n // _LANES)
    rows = -(-rows // row_multiple) * row_multiple
    flat = a.reshape(-1)
    pad = rows * _LANES - n
    if pad:
        flat = jnp.pad(flat, (0, pad))
    return flat.reshape(rows, _LANES)


def gloss(x, x_recon, z1, z2, y_mid_z1, y_mid_z2,
          w_enloss=1.0, w_conloss=1.0, w_advloss=1.0):
    assert x.shape == x_recon.shape
    assert z1.shape == z2.shape
    assert y_mid_z1.shape == y_mid_z2.shape

    # --- choose the x row-tile and pad slabs -------------------------------
    rows_x = -(-x.size // _LANES)
    tile_rows = min(_MAX_TILE_ROWS, -(-rows_x // _SUBLANES) * _SUBLANES)

    x2 = _pad_to_slab(x, tile_rows)
    xr2 = _pad_to_slab(x_recon, tile_rows)
    z12 = _pad_to_slab(z1, _SUBLANES)
    z22 = _pad_to_slab(z2, _SUBLANES)
    y12 = _pad_to_slab(y_mid_z1, _SUBLANES)
    y22 = _pad_to_slab(y_mid_z2, _SUBLANES)

    n_steps = x2.shape[0] // tile_rows

    kernel = functools.partial(
        _gloss_kernel,
        w_en=float(w_enloss), w_con=float(w_conloss), w_adv=float(w_advloss),
        n_x=float(x.size), n_z=float(z1.size), n_y=float(y_mid_z1.size),
    )

    # x/x_recon: row-tiled over the grid. z/y: full-block, constant block
    # index so they are DMA'd only once.
    x_spec = pl.BlockSpec((tile_rows, _LANES), lambda i: (i, 0))
    full = lambda a: pl.BlockSpec(a.shape, lambda i: (0, 0))

    grid_spec = pltpu.PrefetchScalarGridSpec(
        num_scalar_prefetch=0,
        grid=(n_steps,),
        in_specs=[x_spec, x_spec, full(z12), full(z22), full(y12), full(y22)],
        out_specs=pl.BlockSpec(memory_space=pltpu.MemorySpace.SMEM),
        scratch_shapes=[pltpu.VMEM((1, _LANES), jnp.float32)],
    )

    itemsize = jnp.dtype(x.dtype).itemsize
    cost = pl.CostEstimate(
        flops=3 * (x.size + z1.size + y_mid_z1.size),
        transcendentals=0,
        bytes_accessed=2 * itemsize * (x.size + z1.size + y_mid_z1.size) + 4,
    )

    out = pl.pallas_call(
        kernel,
        out_shape=jax.ShapeDtypeStruct((1, 1), jnp.float32),
        grid_spec=grid_spec,
        compiler_params=pltpu.CompilerParams(
            dimension_semantics=("arbitrary",),  # reduction axis: output reused
        ),
        cost_estimate=cost,
    )(x2, xr2, z12, z22, y12, y22)
    return out[0, 0]


def gloss_ref(x, x_recon, z1, z2, y1, y2, w_en=1.0, w_con=1.0, w_adv=1.0):
    enc = jnp.mean((z1 - z2) ** 2)
    con = jnp.mean(jnp.abs(x - x_recon))
    adv = jnp.mean((y1 - y2) ** 2)
    return w_en * enc + w_con * con + w_adv * adv


if __name__ == "__main__":
    key = jax.random.PRNGKey(0)
    k = jax.random.split(key, 6)

    # Small shapes consistent with GANomaly's forward:
    #   images x / x_recon : NCHW (2, 4, 16, 16)
    #   latents z1 / z2    : (2, 128)
    #   discriminator mid features y_mid_* : NCHW (2, 4, 4, 4)
    x = jax.random.normal(k[0], (2, 4, 16, 16), jnp.float32)
    x_recon = jax.random.normal(k[1], (2, 4, 16, 16), jnp.float32)
    z1 = jax.random.normal(k[2], (2, 128), jnp.float32)
    z2 = jax.random.normal(k[3], (2, 128), jnp.float32)
    y_mid_z1 = jax.random.normal(k[4], (2, 4, 4, 4), jnp.float32)
    y_mid_z2 = jax.random.normal(k[5], (2, 4, 4, 4), jnp.float32)

    out = gloss(x, x_recon, z1, z2, y_mid_z1, y_mid_z2,
                w_enloss=1.0, w_conloss=1.0, w_advloss=1.0)
    out = jax.block_until_ready(out)

    ref = gloss_ref(x, x_recon, z1, z2, y_mid_z1, y_mid_z2)
    assert jnp.allclose(out, ref, rtol=1e-5, atol=1e-5), (out, ref)

    print("KERNEL_OK")
</pallas_src>

<mosaic_0001>
module attributes {stable_mosaic.version = 11 : i64} {
  func.func @_gloss_kernel(%arg0: i32, %arg1: memref<16x128xf32, #tpu.memory_space<vmem>>, %arg2: memref<16x128xf32, #tpu.memory_space<vmem>>, %arg3: memref<8x128xf32, #tpu.memory_space<vmem>>, %arg4: memref<8x128xf32, #tpu.memory_space<vmem>>, %arg5: memref<8x128xf32, #tpu.memory_space<vmem>>, %arg6: memref<8x128xf32, #tpu.memory_space<vmem>>, %arg7: memref<1x1xf32, #tpu.memory_space<smem>>, %arg8: memref<1x128xf32, #tpu.memory_space<vmem>>) attributes {dimension_semantics = [#tpu.dimension_semantics<arbitrary>], iteration_bounds = array<i64: 1>, scalar_prefetch = 0 : i64, scratch_operands = 1 : i64, tpu.core_type = #tpu.core_type<tc>, window_params = [{transform_indices = @transform_0, window_bounds = array<i64: 16, 128>}, {transform_indices = @transform_1, window_bounds = array<i64: 16, 128>}, {pipeline_mode = #tpu.pipeline_mode<synchronous>, transform_indices = @transform_2, window_bounds = array<i64: 8, 128>}, {pipeline_mode = #tpu.pipeline_mode<synchronous>, transform_indices = @transform_3, window_bounds = array<i64: 8, 128>}, {pipeline_mode = #tpu.pipeline_mode<synchronous>, transform_indices = @transform_4, window_bounds = array<i64: 8, 128>}, {pipeline_mode = #tpu.pipeline_mode<synchronous>, transform_indices = @transform_5, window_bounds = array<i64: 8, 128>}, {transform_indices = @transform_6, window_bounds = array<i64: 1, 1>}]} {
    %c0_i32 = arith.constant 0 : i32
    %0 = arith.cmpi eq, %arg0, %c0_i32 : i32
    %1 = arith.extui %0 : i1 to i32
    %c0_i32_0 = arith.constant 0 : i32
    %2 = arith.cmpi ne, %1, %c0_i32_0 : i32
    scf.if %2 {
      %c0_11 = arith.constant 0 : index
      %c0_12 = arith.constant 0 : index
      %17 = vector.load %arg3[%c0_11, %c0_12] : memref<8x128xf32, #tpu.memory_space<vmem>>, vector<8x128xf32>
      %c0_13 = arith.constant 0 : index
      %c0_14 = arith.constant 0 : index
      %18 = vector.load %arg4[%c0_13, %c0_14] : memref<8x128xf32, #tpu.memory_space<vmem>>, vector<8x128xf32>
      %19 = arith.subf %17, %18 : vector<8x128xf32>
      %c0_15 = arith.constant 0 : index
      %c0_16 = arith.constant 0 : index
      %20 = vector.load %arg5[%c0_15, %c0_16] : memref<8x128xf32, #tpu.memory_space<vmem>>, vector<8x128xf32>
      %c0_17 = arith.constant 0 : index
      %c0_18 = arith.constant 0 : index
      %21 = vector.load %arg6[%c0_17, %c0_18] : memref<8x128xf32, #tpu.memory_space<vmem>>, vector<8x128xf32>
      %22 = arith.subf %20, %21 : vector<8x128xf32>
      %23 = arith.mulf %19, %19 : vector<8x128xf32>
      %cst_19 = arith.constant dense<0.000000e+00> : vector<128xf32>
      %24 = vector.multi_reduction <add>, %23, %cst_19 [0] : vector<8x128xf32> to vector<128xf32>
      %25 = vector.shape_cast %24 : vector<128xf32> to vector<1x128xf32>
      %cst_20 = arith.constant 3.906250e-03 : f32
      %26 = vector.broadcast %cst_20 : f32 to vector<1x128xf32>
      %27 = arith.mulf %26, %25 : vector<1x128xf32>
      %28 = arith.mulf %22, %22 : vector<8x128xf32>
      %cst_21 = arith.constant dense<0.000000e+00> : vector<128xf32>
      %29 = vector.multi_reduction <add>, %28, %cst_21 [0] : vector<8x128xf32> to vector<128xf32>
      %30 = vector.shape_cast %29 : vector<128xf32> to vector<1x128xf32>
      %cst_22 = arith.constant 7.812500e-03 : f32
      %31 = vector.broadcast %cst_22 : f32 to vector<1x128xf32>
      %32 = arith.mulf %31, %30 : vector<1x128xf32>
      %33 = arith.addf %27, %32 : vector<1x128xf32>
      %c0_23 = arith.constant 0 : index
      %c0_24 = arith.constant 0 : index
      %34 = vector.load %arg8[%c0_23, %c0_24] : memref<1x128xf32, #tpu.memory_space<vmem>>, vector<1x128xf32>
      tpu.vector_store %arg8[%c0_23, %c0_24], %33 {strides = array<i32>} : memref<1x128xf32, #tpu.memory_space<vmem>>, vector<1x128xf32>,
    } else {
    }
    %c0 = arith.constant 0 : index
    %c0_1 = arith.constant 0 : index
    %3 = vector.load %arg1[%c0, %c0_1] : memref<16x128xf32, #tpu.memory_space<vmem>>, vector<16x128xf32>
    %c0_2 = arith.constant 0 : index
    %c0_3 = arith.constant 0 : index
    %4 = vector.load %arg2[%c0_2, %c0_3] : memref<16x128xf32, #tpu.memory_space<vmem>>, vector<16x128xf32>
    %5 = arith.subf %3, %4 : vector<16x128xf32>
    %c0_4 = arith.constant 0 : index
    %c0_5 = arith.constant 0 : index
    %6 = vector.load %arg8[%c0_4, %c0_5] : memref<1x128xf32, #tpu.memory_space<vmem>>, vector<1x128xf32>
    %7 = math.absf %5 : vector<16x128xf32>
    %cst = arith.constant dense<0.000000e+00> : vector<128xf32>
    %8 = vector.multi_reduction <add>, %7, %cst [0] : vector<16x128xf32> to vector<128xf32>
    %9 = vector.shape_cast %8 : vector<128xf32> to vector<1x128xf32>
    %cst_6 = arith.constant 4.8828125E-4 : f32
    %10 = vector.broadcast %cst_6 : f32 to vector<1x128xf32>
    %11 = arith.mulf %10, %9 : vector<1x128xf32>
    %12 = arith.addf %6, %11 : vector<1x128xf32>
    %c0_7 = arith.constant 0 : index
    %c0_8 = arith.constant 0 : index
    %13 = vector.load %arg8[%c0_7, %c0_8] : memref<1x128xf32, #tpu.memory_space<vmem>>, vector<1x128xf32>
    tpu.vector_store %arg8[%c0_7, %c0_8], %12 {strides = array<i32>} : memref<1x128xf32, #tpu.memory_space<vmem>>, vector<1x128xf32>,
    %c0_i32_9 = arith.constant 0 : i32
    %14 = arith.cmpi eq, %arg0, %c0_i32_9 : i32
    %15 = arith.extui %14 : i1 to i32
    %c0_i32_10 = arith.constant 0 : i32
    %16 = arith.cmpi ne, %15, %c0_i32_10 : i32
    scf.if %16 {
      %c0_11 = arith.constant 0 : index
      %c0_12 = arith.constant 0 : index
      %17 = vector.load %arg8[%c0_11, %c0_12] : memref<1x128xf32, #tpu.memory_space<vmem>>, vector<1x128xf32>
      %18 = vector.shape_cast %17 : vector<1x128xf32> to vector<1x1x128xf32>
      %cst_13 = arith.constant dense<0.000000e+00> : vector<1xf32>
      %19 = vector.multi_reduction <add>, %18, %cst_13 [1, 2] : vector<1x1x128xf32> to vector<1xf32>
      %20 = vector.shape_cast %19 : vector<1xf32> to vector<1x1x1xf32>
      %21 = vector.extract %20[0, 0, 0] : f32 from vector<1x1x1xf32>
      %c0_14 = arith.constant 0 : index
      %c0_15 = arith.constant 0 : index
      %22 = memref.load %arg7[%c0_14, %c0_15] : memref<1x1xf32, #tpu.memory_space<smem>>
      memref.store %21, %arg7[%c0_14, %c0_15] : memref<1x1xf32, #tpu.memory_space<smem>>
    } else {
    }
    return
  }
  func.func @transform_0(%arg0: i32) -> (i32, i32) {
    %c0_i32 = arith.constant 0 : i32
    %c0_i32_0 = arith.constant 0 : i32
    return %arg0, %c0_i32 : i32, i32
  }
  func.func @transform_1(%arg0: i32) -> (i32, i32) {
    %c0_i32 = arith.constant 0 : i32
    %c0_i32_0 = arith.constant 0 : i32
    return %arg0, %c0_i32 : i32, i32
  }
  func.func @transform_2(%arg0: i32) -> (i32, i32) {
    %c0_i32 = arith.constant 0 : i32
    %c0_i32_0 = arith.constant 0 : i32
    %c0_i32_1 = arith.constant 0 : i32
    return %c0_i32, %c0_i32_0 : i32, i32
  }
  func.func @transform_3(%arg0: i32) -> (i32, i32) {
    %c0_i32 = arith.constant 0 : i32
    %c0_i32_0 = arith.constant 0 : i32
    %c0_i32_1 = arith.constant 0 : i32
    return %c0_i32, %c0_i32_0 : i32, i32
  }
  func.func @transform_4(%arg0: i32) -> (i32, i32) {
    %c0_i32 = arith.constant 0 : i32
    %c0_i32_0 = arith.constant 0 : i32
    %c0_i32_1 = arith.constant 0 : i32
    return %c0_i32, %c0_i32_0 : i32, i32
  }
  func.func @transform_5(%arg0: i32) -> (i32, i32) {
    %c0_i32 = arith.constant 0 : i32
    %c0_i32_0 = arith.constant 0 : i32
    %c0_i32_1 = arith.constant 0 : i32
    return %c0_i32, %c0_i32_0 : i32, i32
  }
  func.func @transform_6(%arg0: i32) -> (i32, i32) {
    %c0_i32 = arith.constant 0 : i32
    %c0_i32_0 = arith.constant 0 : i32
    %c0_i32_1 = arith.constant 0 : i32
    return %c0_i32, %c0_i32_0 : i32, i32
  }
}

</mosaic_0001>

<llo_original>
// kernel: tpu_custom_call.1
$region0: #{tpu_custom_call.1}
  #allocation0 [shape = 'u32[]', space=smem, size = 0x4, offset = 0x4, fixed_abs, tag = 'smem constant byte address 0x4 - core index']
  #allocation1 [shape = 'u32[72,128]{1,0:T(1,128)}', space=vmem, size = 0x9000, scoped, tag = 'internal scratch']
  #allocation2 [shape = 'f32[1,128]{1,0:T(1,128)}', space=vmem, size = 0x200, scoped, tag = 'scratch operand']
  %s0 = inlined_call_operand.hbm [shape: f32[16,128], index: 0, kind: input, shape index: {}]
  %s1 = inlined_call_operand.hbm [shape: f32[16,128], index: 1, kind: input, shape index: {}]
  %s2 = inlined_call_operand.hbm [shape: f32[8,128], index: 2, kind: input, shape index: {}]
  %s3 = inlined_call_operand.hbm [shape: f32[8,128], index: 3, kind: input, shape index: {}]
  %s4 = inlined_call_operand.hbm [shape: f32[8,128], index: 4, kind: input, shape index: {}]
  %s5 = inlined_call_operand.hbm [shape: f32[8,128], index: 5, kind: input, shape index: {}]
  %s6 = inlined_call_operand.hbm [shape: f32[1,1], index: 6, kind: output, shape index: {}]
  %s7 = sld [smem:[#allocation0]]
  $region66: #{tpu_custom_call.1} parent=0
    _
  %s9 = ssub.s32 1, %s7
  %s10 = scalar_select 0, %s9, %s7
  $region1: #{tpu_custom_call.1} parent=0
    #allocation3 [shape = 'u8[8192]{0}', space=vmem, size = 0x2000, scoped, tag = 'input window, operand 0, single buffered']
    #allocation4 [shape = 's32[1]{0}', space=sflag, size = 0x4, scoped, tag = 'scoped memory for tpu_custom_call.1']
    #allocation5 [shape = 's32[1]{0}', space=sflag, size = 0x4, scoped, tag = 'scoped memory for tpu_custom_call.1']
    #allocation6 [shape = 'u8[8192]{0}', space=vmem, size = 0x2000, scoped, tag = 'input window, operand 1, single buffered']
    #allocation7 [shape = 's32[1]{0}', space=sflag, size = 0x4, scoped, tag = 'scoped memory for tpu_custom_call.1']
    #allocation8 [shape = 'u8[4096]{0}', space=vmem, size = 0x1000, scoped, tag = 'input window, operand 2, single buffered']
    #allocation9 [shape = 'u8[4096]{0}', space=vmem, size = 0x1000, scoped, tag = 'input window, operand 3, single buffered']
    #allocation10 [shape = 's32[1]{0}', space=sflag, size = 0x4, scoped, tag = 'scoped memory for tpu_custom_call.1']
    #allocation11 [shape = 'u8[4096]{0}', space=vmem, size = 0x1000, scoped, tag = 'input window, operand 4, single buffered']
    #allocation12 [shape = 'u8[4096]{0}', space=vmem, size = 0x1000, scoped, tag = 'input window, operand 5, single buffered']
    #allocation13 [shape = 's32[1]{0}', space=sflag, size = 0x4, scoped, tag = 'scoped memory for tpu_custom_call.1']
    #allocation14 [shape = 'u8[512]{0}', space=smem, size = 0x200, scoped, tag = 'output window, operand 0, single buffered']
    %11 = vsyncpa [#allocation4], 0
    %12 = vsyncpa [#allocation7], 0
    %13 = vsyncpa [#allocation10], 0
    %14 = vsyncpa [#allocation13], 0
    %15 = vsyncpa [#allocation5], 0
    // Predicated region
    $region2: #{tpu_custom_call.1} parent=1 // pred_check
      _
    $region3: #{tpu_custom_call.1} parent=1 // pred_check_branch
      %17 = sbr.rel (0) target = $region5
    $region4: #{tpu_custom_call.1} parent=1 // pred_region
      %19 = vsyncadd [#allocation4], 0
      %s20 = sshll.u32 %s0, 4
      %s21 = int_to_ptr.hbm [resolvable:$true] %s20
      %s22 = sshll.u32 [#allocation3], 4
      %s23 = int_to_ptr.vmem [resolvable:$true] %s22
      %28 = dma.hbm_to_vmem [thread:$0]  %s21, 256, %s23, [#allocation4], 128, 128, 8
    $region5: #{tpu_custom_call.1} parent=1 // pred_fallthru
      _
    // Predicated region
    $region6: #{tpu_custom_call.1} parent=1 // pred_check
      _
    $region7: #{tpu_custom_call.1} parent=1 // pred_check_branch
      %30 = sbr.rel (0) target = $region9
    $region8: #{tpu_custom_call.1} parent=1 // pred_region
      %32 = vsyncadd [#allocation7], 0
      %s33 = sshll.u32 %s1, 4
      %s34 = int_to_ptr.hbm [resolvable:$true] %s33
      %s35 = sshll.u32 [#allocation6], 4
      %s36 = int_to_ptr.vmem [resolvable:$true] %s35
      %41 = dma.hbm_to_vmem [thread:$0]  %s34, 256, %s36, [#allocation7], 128, 128, 8
    $region9: #{tpu_custom_call.1} parent=1 // pred_fallthru
      _
    // Predicated region
    $region10: #{tpu_custom_call.1} parent=1 // pred_check
      _
    $region11: #{tpu_custom_call.1} parent=1 // pred_check_branch
      %43 = sbr.rel (0) target = $region13
    $region12: #{tpu_custom_call.1} parent=1 // pred_region
      %45 = vsyncadd [#allocation7], 0
      %s47 = sshll.u32 %s2, 4
      %s48 = int_to_ptr.hbm [resolvable:$true] %s47
      %s49 = sshll.u32 [#allocation8], 4
      %s50 = int_to_ptr.vmem [resolvable:$true] %s49
      %52 = dma.hbm_to_vmem [thread:$0]  %s48, 128, %s50, [#allocation7]
    $region13: #{tpu_custom_call.1} parent=1 // pred_fallthru
      _
    // Predicated region
    $region14: #{tpu_custom_call.1} parent=1 // pred_check
      _
    $region15: #{tpu_custom_call.1} parent=1 // pred_check_branch
      %54 = sbr.rel (0) target = $region17
    $region16: #{tpu_custom_call.1} parent=1 // pred_region
      %56 = vsyncadd [#allocation10], 0
      %s58 = sshll.u32 %s3, 4
      %s59 = int_to_ptr.hbm [resolvable:$true] %s58
      %s60 = sshll.u32 [#allocation9], 4
      %s61 = int_to_ptr.vmem [resolvable:$true] %s60
      %63 = dma.hbm_to_vmem [thread:$0]  %s59, 128, %s61, [#allocation10]
    $region17: #{tpu_custom_call.1} parent=1 // pred_fallthru
      _
    // Predicated region
    $region18: #{tpu_custom_call.1} parent=1 // pred_check
      _
    $region19: #{tpu_custom_call.1} parent=1 // pred_check_branch
      %65 = sbr.rel (0) target = $region21
    $region20: #{tpu_custom_call.1} parent=1 // pred_region
      %67 = vsyncadd [#allocation10], 0
      %s69 = sshll.u32 %s4, 4
      %s70 = int_to_ptr.hbm [resolvable:$true] %s69
      %s71 = sshll.u32 [#allocation11], 4
      %s72 = int_to_ptr.vmem [resolvable:$true] %s71
      %74 = dma.hbm_to_vmem [thread:$0]  %s70, 128, %s72, [#allocation10]
    $region21: #{tpu_custom_call.1} parent=1 // pred_fallthru
      _
    // Predicated region
    $region22: #{tpu_custom_call.1} parent=1 // pred_check
      _
    $region23: #{tpu_custom_call.1} parent=1 // pred_check_branch
      %76 = sbr.rel (0) target = $region25
    $region24: #{tpu_custom_call.1} parent=1 // pred_region
      %78 = vsyncadd [#allocation13], 0
      %s80 = sshll.u32 %s5, 4
      %s81 = int_to_ptr.hbm [resolvable:$true] %s80
      %s82 = sshll.u32 [#allocation12], 4
      %s83 = int_to_ptr.vmem [resolvable:$true] %s82
      %85 = dma.hbm_to_vmem [thread:$0]  %s81, 128, %s83, [#allocation13]
    $region25: #{tpu_custom_call.1} parent=1 // pred_fallthru
      _
    // Predicated region
    $region26: #{tpu_custom_call.1} parent=1 // pred_check
      _
    $region27: #{tpu_custom_call.1} parent=1 // pred_check_branch
      %87 = sbr.rel (0) target = $region29
    $region28: #{tpu_custom_call.1} parent=1 // pred_region
      %89 = dma.done [#allocation4], 256
    $region29: #{tpu_custom_call.1} parent=1 // pred_fallthru
      _
    // Predicated region
    $region30: #{tpu_custom_call.1} parent=1 // pred_check
      _
    $region31: #{tpu_custom_call.1} parent=1 // pred_check_branch
      %91 = sbr.rel (0) target = $region33
    $region32: #{tpu_custom_call.1} parent=1 // pred_region
      %93 = dma.done [#allocation7], 256
    $region33: #{tpu_custom_call.1} parent=1 // pred_fallthru
      _
    // Predicated region
    $region34: #{tpu_custom_call.1} parent=1 // pred_check
      _
    $region35: #{tpu_custom_call.1} parent=1 // pred_check_branch
      %95 = sbr.rel (0) target = $region37
    $region36: #{tpu_custom_call.1} parent=1 // pred_region
      %97 = dma.done [#allocation7], 128
    $region37: #{tpu_custom_call.1} parent=1 // pred_fallthru
      _
    // Predicated region
    $region38: #{tpu_custom_call.1} parent=1 // pred_check
      _
    $region39: #{tpu_custom_call.1} parent=1 // pred_check_branch
      %99 = sbr.rel (0) target = $region41
    $region40: #{tpu_custom_call.1} parent=1 // pred_region
      %101 = dma.done [#allocation10], 128
    $region41: #{tpu_custom_call.1} parent=1 // pred_fallthru
      _
    // Predicated region
    $region42: #{tpu_custom_call.1} parent=1 // pred_check
      _
    $region43: #{tpu_custom_call.1} parent=1 // pred_check_branch
      %103 = sbr.rel (0) target = $region45
    $region44: #{tpu_custom_call.1} parent=1 // pred_region
      %105 = dma.done [#allocation10], 128
    $region45: #{tpu_custom_call.1} parent=1 // pred_fallthru
      _
    // Predicated region
    $region46: #{tpu_custom_call.1} parent=1 // pred_check
      _
    $region47: #{tpu_custom_call.1} parent=1 // pred_check_branch
      %107 = sbr.rel (0) target = $region49
    $region48: #{tpu_custom_call.1} parent=1 // pred_region
      %109 = dma.done [#allocation13], 128
    $region49: #{tpu_custom_call.1} parent=1 // pred_fallthru
      _
    %p110 = scmp.eq.s32.totalorder 0, 0
    // Predicated region
    $region50: #{tpu_custom_call.1} parent=1 // pred_check
      %p111 = pneg %p110
    $region51: #{tpu_custom_call.1} parent=1 // pred_check_branch
      %113 = sbr.rel (%p111) target = $region53
    $region52: #{tpu_custom_call.1} parent=1 // pred_region
      %v114 = vld [vmem:[#allocation8] sm:$0xff]
      %v115 = vld [vmem:[#allocation9] sm:$0xff]
      %v116 = vsub.f32 %v114, %v115
      %v117 = vld [vmem:[#allocation11] sm:$0xff]
      %v118 = vld [vmem:[#allocation12] sm:$0xff]
      %v119 = vsub.f32 %v117, %v118
      %v120 = vmul.f32 %v116, %v116
      %v121 = vrot.slane %v120, 4
      %v122 = vadd.f32 %v120, %v121
      %v123 = vrot.slane %v122, 2
      %v124 = vadd.f32 %v122, %v123
      %v125 = vrot.slane %v124, 1
      %v126 = vadd.f32 %v124, %v125
      %v127 = vmul.f32 %v126, 0.00390625
      %v128 = vmul.f32 %v119, %v119
      %v129 = vrot.slane %v128, 4
      %v130 = vadd.f32 %v128, %v129
      %v131 = vrot.slane %v130, 2
      %v132 = vadd.f32 %v130, %v131
      %v133 = vrot.slane %v132, 1
      %v134 = vadd.f32 %v132, %v133
      %v135 = vmul.f32 %v134, 0.0078125
      %v136 = vadd.f32 %v127, %v135
      %137 = vst [vmem:[#allocation2] sm:$0x1] %v136
    $region53: #{tpu_custom_call.1} parent=1 // pred_fallthru
      _
    %v138 = vld [vmem:[#allocation3] sm:$0xff]
    %v139 = vld [vmem:[#allocation3 + $0x8] sm:$0xff]
    %v140 = vld [vmem:[#allocation6] sm:$0xff]
    %v141 = vld [vmem:[#allocation6 + $0x8] sm:$0xff]
    %v142 = vsub.f32 %v138, %v140
    %v143 = vsub.f32 %v139, %v141
    %v144 = vld [vmem:[#allocation2] sm:$0x1]
    %v145 = vand.u32 2147483647, %v142
    %v146 = vand.u32 2147483647, %v143
    %v147 = vadd.f32 %v145, %v146
    %v148 = vrot.slane %v147, 4
    %v149 = vadd.f32 %v147, %v148
    %v150 = vrot.slane %v149, 2
    %v151 = vadd.f32 %v149, %v150
    %v152 = vrot.slane %v151, 1
    %v153 = vadd.f32 %v151, %v152
    %v154 = vmul.f32 %v153, 0.00048828125
    %v155 = vadd.f32 %v144, %v154
    %156 = vst [vmem:[#allocation2] sm:$0x1] %v155
    // Predicated region
    $region54: #{tpu_custom_call.1} parent=1 // pred_check
      %p157 = pneg %p110
    $region55: #{tpu_custom_call.1} parent=1 // pred_check_branch
      %159 = sbr.rel (%p157) target = $region57
    $region56: #{tpu_custom_call.1} parent=1 // pred_region
      %v160 = vld [vmem:[#allocation2] sm:$0x1]
      %vm161 = vcmask 1040384
      %v162 = vsel %vm161, %v160, 0.0
      %163 = vadd.xlane.f32.xlu0 %v162
      %v164 = vpop.xlane.xlu0 %163
      %v165 = vrot.slane %v164, 4
      %v166 = vadd.f32 %v164, %v165
      %v167 = vrot.slane %v166, 2
      %v168 = vadd.f32 %v166, %v167
      %v169 = vrot.slane %v168, 1
      %v170 = vadd.f32 %v168, %v169
      %s171 = vtos %v170
      %s172 = scalar_lea.smem [#allocation14], 0
      %173 = sst [smem:[%s172]] %s171
    $region57: #{tpu_custom_call.1} parent=1 // pred_fallthru
      _
    // Predicated region
    $region58: #{tpu_custom_call.1} parent=1 // pred_check
      _
    $region59: #{tpu_custom_call.1} parent=1 // pred_check_branch
      %175 = sbr.rel (0) target = $region61
    $region60: #{tpu_custom_call.1} parent=1 // pred_region
      %177 = vsyncadd [#allocation5], 0
      %s179 = sshll.u32 %s6, 4
      %s180 = int_to_ptr.hbm [resolvable:$true] %s179
      %182 = dma.smem_to_hbm [#allocation14], 16, %s180, [#allocation5]
    $region61: #{tpu_custom_call.1} parent=1 // pred_fallthru
      _
    // Predicated region
    $region62: #{tpu_custom_call.1} parent=1 // pred_check
      _
    $region63: #{tpu_custom_call.1} parent=1 // pred_check_branch
      %184 = sbr.rel (0) target = $region65
    $region64: #{tpu_custom_call.1} parent=1 // pred_region
      %186 = dma.done [#allocation5], 16
    $region65: #{tpu_custom_call.1} parent=1 // pred_fallthru
      _
    %187 = sfence
    %188 = vsyncpa [#allocation4], 1
    %189 = vsyncpa [#allocation7], 1
    %190 = vsyncpa [#allocation10], 1
    %191 = vsyncpa [#allocation13], 1
    %192 = vsyncpa [#allocation5], 1

</llo_original>
